<compile_context>
chip_gen: v5e
topology: v5e:2x2
jax: 0.10.0
libtpu: 0.0.40
codegen_flags: <defaults>
</compile_context>

<pallas_src>
import numpy as np
import jax
import jax.numpy as jnp
from jax.experimental import pallas as pl
from jax.experimental.pallas import tpu as pltpu


def _round_up(x, m):
    return ((x + m - 1) // m) * m


def _mlp_kernel(x_ref, w1t_ref, b1_ref, w2t_ref, b2_ref, w3_ref, b3_ref, o_ref):
    # Transposed layout: features on sublanes, batch on lanes.
    x = x_ref[...]                                        # (i_size, TB)
    i_size = x_ref.shape[0]
    o_size = o_ref.shape[0]

    # ---- Layer 1: K = i_size is tiny -> VPU FMAs seeded with the bias, no MXU trip.
    w1t = w1t_ref[...]                                    # (h1, i_size)
    acc = b1_ref[...]                                     # (h1, 1) -> broadcasts over lanes
    for k in range(i_size):                               # static, tiny unroll
        acc = acc + w1t[:, k:k + 1] * x[k:k + 1, :]       # (h1,1)*(1,TB) -> (h1,TB)
    h1t = jnp.maximum(acc, 0.01 * acc)                    # LeakyReLU(0.01)

    # ---- Layer 2: W2^T (h2,h1) @ h1T (h1,TB) on the MXU, f32 accumulation.
    h2t = jnp.dot(w2t_ref[...], h1t,
                  preferred_element_type=jnp.float32) + b2_ref[...]   # (h2, TB)
    h2t = jnp.maximum(h2t, 0.01 * h2t)                    # LeakyReLU(0.01)

    # ---- Layer 3: N = o_size tiny -> VPU multiply + sublane (XLU) reduce, no MXU.
    w3 = w3_ref[...]                                      # (h2, o_size)
    b3 = b3_ref[...]                                      # (o_size, 1)
    rows = []
    for o in range(o_size):                               # static, tiny unroll
        r = jnp.sum(w3[:, o:o + 1] * h2t, axis=0, keepdims=True) + b3[o:o + 1, :]
        rows.append(r)                                    # (1, TB)
    out = rows[0] if o_size == 1 else jnp.concatenate(rows, axis=0)   # (o_size, TB)

    o_ref[...] = jnp.tanh(out).astype(o_ref.dtype)


def policy_forward(obs, params, *, block_b=4096):
    """obs: (B, i_size) f32. params: dict of (in,out) weights and (1,out) biases."""
    B, i_size = obs.shape
    h1 = params["w1"].shape[1]
    h2 = params["w2"].shape[1]
    o_size = params["w3"].shape[1]

    # Lane-dense batch tile: multiple of 128 (lane width), capped by block_b.
    TB = min(_round_up(block_b, 128), _round_up(B, 128))
    Bp = _round_up(B, TB)
    grid = (Bp // TB,)

    # Wrapper-side layout plumbing (a few KB): batch onto lanes, features onto sublanes.
    obs_t = jnp.pad(obs, ((0, Bp - B), (0, 0))).T         # (i_size, Bp)
    w1t = params["w1"].T                                  # (h1, i_size)
    b1t = params["b1"].T                                  # (h1, 1)
    w2t = params["w2"].T                                  # (h2, h1)
    b2t = params["b2"].T                                  # (h2, 1)
    w3 = params["w3"]                                     # (h2, o_size)
    b3t = params["b3"].T                                  # (o_size, 1)

    def resident(arr):
        # Weights / biases: same block every grid step -> stay resident in VMEM.
        return pl.BlockSpec(arr.shape, lambda i: (0, 0))

    in_specs = [
        pl.BlockSpec((i_size, TB), lambda i: (0, i)),     # obs: tiled along lane/batch axis
        resident(w1t), resident(b1t),
        resident(w2t), resident(b2t),
        resident(w3), resident(b3t),
    ]
    out_specs = pl.BlockSpec((o_size, TB), lambda i: (0, i))

    weight_bytes = sum(int(np.prod(params[k].shape)) * params[k].dtype.itemsize
                       for k in ("w1", "b1", "w2", "b2", "w3", "b3"))
    cost = pl.CostEstimate(
        flops=2 * Bp * (i_size * h1 + h1 * h2 + h2 * o_size),
        transcendentals=Bp * o_size,
        bytes_accessed=Bp * i_size * 4 + Bp * o_size * 4 + weight_bytes,
    )

    out_t = pl.pallas_call(
        _mlp_kernel,
        out_shape=jax.ShapeDtypeStruct((o_size, Bp), jnp.float32),
        grid=grid,
        in_specs=in_specs,
        out_specs=out_specs,
        compiler_params=pltpu.CompilerParams(
            dimension_semantics=("parallel",),            # shards batch on v7x when grid>=2
        ),
        cost_estimate=cost,
    )(obs_t, w1t, b1t, w2t, b2t, w3, b3t)

    return out_t[:, :B].T                                 # back to (B, o_size)


def init_params(key, i_size, hidden_sizes, o_size, dtype=jnp.float32):
    """Deterministic init matching the PyTorch module's __init__ semantics:
       hidden layers: weight ~ U(-1/sqrt(fan_in), 1/sqrt(fan_in)), bias = 0
       last layer:    weight, bias ~ U(-0.003, 0.003)
    """
    assert len(hidden_sizes) == 2, "kernel is written for two hidden layers"
    h1, h2 = hidden_sizes
    k1, k2, k3, k4 = jax.random.split(key, 4)

    lim1 = 1.0 / np.sqrt(i_size)
    lim2 = 1.0 / np.sqrt(h1)
    return {
        "w1": jax.random.uniform(k1, (i_size, h1), jnp.float32, -lim1, lim1).astype(dtype),
        "b1": jnp.zeros((1, h1), dtype),
        "w2": jax.random.uniform(k2, (h1, h2), jnp.float32, -lim2, lim2).astype(dtype),
        "b2": jnp.zeros((1, h2), dtype),
        "w3": jax.random.uniform(k3, (h2, o_size), jnp.float32, -0.003, 0.003).astype(dtype),
        "b3": jax.random.uniform(k4, (1, o_size), jnp.float32, -0.003, 0.003).astype(dtype),
    }


def _reference_forward(obs, p):
    h1 = obs @ p["w1"].astype(jnp.float32) + p["b1"].astype(jnp.float32)
    h1 = jnp.where(h1 >= 0, h1, 0.01 * h1)
    h2 = h1 @ p["w2"].astype(jnp.float32) + p["b2"].astype(jnp.float32)
    h2 = jnp.where(h2 >= 0, h2, 0.01 * h2)
    return jnp.tanh(h2 @ p["w3"].astype(jnp.float32) + p["b3"].astype(jnp.float32))


if __name__ == "__main__":
    # MountainCarContinuous-style sizes: obs dim = 2, action dim = 1.
    i_size, hidden_sizes, o_size = 2, [32, 32], 1

    key = jax.random.PRNGKey(0)
    k_obs, k_obs2, k_par = jax.random.split(key, 3)
    params = init_params(k_par, i_size, hidden_sizes, o_size)

    fwd = jax.jit(policy_forward, static_argnames=("block_b",))

    # Small batch (single tile, lane padding exercised).
    obs = jax.random.normal(k_obs, (8, i_size), jnp.float32)
    action = jax.block_until_ready(fwd(obs, params))
    ref = _reference_forward(obs, params)
    assert action.shape == (8, o_size)
    assert jnp.allclose(action, ref, atol=1e-5, rtol=1e-5), "mismatch vs reference (B=8)"

    # Larger, non-divisible batch with a small tile: exercises multi-step grid
    # pipelining (grid=(3,)) and megacore sharding on v7x.
    obs2 = jax.random.normal(k_obs2, (300, i_size), jnp.float32)
    action2 = jax.block_until_ready(fwd(obs2, params, block_b=128))
    ref2 = _reference_forward(obs2, params)
    assert action2.shape == (300, o_size)
    assert jnp.allclose(action2, ref2, atol=1e-5, rtol=1e-5), "mismatch vs reference (B=300)"

    print("KERNEL_OK")
</pallas_src>

<mosaic_0001>
module attributes {stable_mosaic.version = 11 : i64} {
  func.func @_mlp_kernel(%arg0: i32, %arg1: memref<2x128xf32, #tpu.memory_space<vmem>>, %arg2: memref<32x2xf32, #tpu.memory_space<vmem>>, %arg3: memref<32x1xf32, #tpu.memory_space<vmem>>, %arg4: memref<32x32xf32, #tpu.memory_space<vmem>>, %arg5: memref<32x1xf32, #tpu.memory_space<vmem>>, %arg6: memref<32x1xf32, #tpu.memory_space<vmem>>, %arg7: memref<1x1xf32, #tpu.memory_space<vmem>>, %arg8: memref<1x128xf32, #tpu.memory_space<vmem>>) attributes {dimension_semantics = [#tpu.dimension_semantics<parallel>], iteration_bounds = array<i64: 1>, scalar_prefetch = 0 : i64, scratch_operands = 0 : i64, tpu.core_type = #tpu.core_type<tc>, window_params = [{transform_indices = @transform_0, window_bounds = array<i64: 2, 128>}, {pipeline_mode = #tpu.pipeline_mode<synchronous>, transform_indices = @transform_1, window_bounds = array<i64: 32, 2>}, {pipeline_mode = #tpu.pipeline_mode<synchronous>, transform_indices = @transform_2, window_bounds = array<i64: 32, 1>}, {pipeline_mode = #tpu.pipeline_mode<synchronous>, transform_indices = @transform_3, window_bounds = array<i64: 32, 32>}, {pipeline_mode = #tpu.pipeline_mode<synchronous>, transform_indices = @transform_4, window_bounds = array<i64: 32, 1>}, {pipeline_mode = #tpu.pipeline_mode<synchronous>, transform_indices = @transform_5, window_bounds = array<i64: 32, 1>}, {pipeline_mode = #tpu.pipeline_mode<synchronous>, transform_indices = @transform_6, window_bounds = array<i64: 1, 1>}, {transform_indices = @transform_7, window_bounds = array<i64: 1, 128>}]} {
    %c0 = arith.constant 0 : index
    %c0_0 = arith.constant 0 : index
    %0 = vector.load %arg1[%c0, %c0_0] : memref<2x128xf32, #tpu.memory_space<vmem>>, vector<2x128xf32>
    %c0_1 = arith.constant 0 : index
    %c0_2 = arith.constant 0 : index
    %1 = vector.load %arg2[%c0_1, %c0_2] : memref<32x2xf32, #tpu.memory_space<vmem>>, vector<32x2xf32>
    %c0_3 = arith.constant 0 : index
    %c0_4 = arith.constant 0 : index
    %2 = vector.load %arg3[%c0_3, %c0_4] : memref<32x1xf32, #tpu.memory_space<vmem>>, vector<32x1xf32>
    %3 = vector.extract_strided_slice %1 {offsets = [0, 0], sizes = [32, 1], strides = [1, 1]} : vector<32x2xf32> to vector<32x1xf32>
    %4 = vector.extract_strided_slice %0 {offsets = [0, 0], sizes = [1, 128], strides = [1, 1]} : vector<2x128xf32> to vector<1x128xf32>
    %5 = vector.broadcast %3 : vector<32x1xf32> to vector<32x128xf32>
    %6 = vector.broadcast %4 : vector<1x128xf32> to vector<32x128xf32>
    %7 = arith.mulf %5, %6 : vector<32x128xf32>
    %8 = vector.broadcast %2 : vector<32x1xf32> to vector<32x128xf32>
    %9 = arith.addf %8, %7 : vector<32x128xf32>
    %10 = vector.extract_strided_slice %1 {offsets = [0, 1], sizes = [32, 1], strides = [1, 1]} : vector<32x2xf32> to vector<32x1xf32>
    %11 = vector.extract_strided_slice %0 {offsets = [1, 0], sizes = [1, 128], strides = [1, 1]} : vector<2x128xf32> to vector<1x128xf32>
    %12 = vector.broadcast %10 : vector<32x1xf32> to vector<32x128xf32>
    %13 = vector.broadcast %11 : vector<1x128xf32> to vector<32x128xf32>
    %14 = arith.mulf %12, %13 : vector<32x128xf32>
    %15 = arith.addf %9, %14 : vector<32x128xf32>
    %cst = arith.constant 0.00999999977 : f32
    %16 = vector.broadcast %cst : f32 to vector<32x128xf32>
    %17 = arith.mulf %16, %15 : vector<32x128xf32>
    %18 = arith.maximumf %15, %17 : vector<32x128xf32>
    %c0_5 = arith.constant 0 : index
    %c0_6 = arith.constant 0 : index
    %19 = vector.load %arg4[%c0_5, %c0_6] : memref<32x32xf32, #tpu.memory_space<vmem>>, vector<32x32xf32>
    %cst_7 = arith.constant dense<0.000000e+00> : vector<32x128xf32>
    %20 = tpu.matmul %19, %18, %cst_7 {dimension_numbers = #tpu.dot_dimension_numbers<[1], [0], [0], [1], [0, 0, 1, 1], [], []>} : vector<32x32xf32>, vector<32x128xf32>, vector<32x128xf32> -> vector<32x128xf32>
    %c0_8 = arith.constant 0 : index
    %c0_9 = arith.constant 0 : index
    %21 = vector.load %arg5[%c0_8, %c0_9] : memref<32x1xf32, #tpu.memory_space<vmem>>, vector<32x1xf32>
    %22 = vector.broadcast %21 : vector<32x1xf32> to vector<32x128xf32>
    %23 = arith.addf %20, %22 : vector<32x128xf32>
    %cst_10 = arith.constant 0.00999999977 : f32
    %24 = vector.broadcast %cst_10 : f32 to vector<32x128xf32>
    %25 = arith.mulf %24, %23 : vector<32x128xf32>
    %26 = arith.maximumf %23, %25 : vector<32x128xf32>
    %c0_11 = arith.constant 0 : index
    %c0_12 = arith.constant 0 : index
    %27 = vector.load %arg6[%c0_11, %c0_12] : memref<32x1xf32, #tpu.memory_space<vmem>>, vector<32x1xf32>
    %c0_13 = arith.constant 0 : index
    %c0_14 = arith.constant 0 : index
    %28 = vector.load %arg7[%c0_13, %c0_14] : memref<1x1xf32, #tpu.memory_space<vmem>>, vector<1x1xf32>
    %29 = vector.broadcast %27 : vector<32x1xf32> to vector<32x128xf32>
    %30 = arith.mulf %29, %26 : vector<32x128xf32>
    %cst_15 = arith.constant dense<0.000000e+00> : vector<128xf32>
    %31 = vector.multi_reduction <add>, %30, %cst_15 [0] : vector<32x128xf32> to vector<128xf32>
    %32 = vector.shape_cast %31 : vector<128xf32> to vector<1x128xf32>
    %33 = vector.broadcast %28 : vector<1x1xf32> to vector<1x128xf32>
    %34 = arith.addf %32, %33 : vector<1x128xf32>
    %35 = math.tanh %34 : vector<1x128xf32>
    %c0_16 = arith.constant 0 : index
    %c0_17 = arith.constant 0 : index
    %36 = vector.load %arg8[%c0_16, %c0_17] : memref<1x128xf32, #tpu.memory_space<vmem>>, vector<1x128xf32>
    tpu.vector_store %arg8[%c0_16, %c0_17], %35 {strides = array<i32>} : memref<1x128xf32, #tpu.memory_space<vmem>>, vector<1x128xf32>,
    return
  }
  func.func @transform_0(%arg0: i32) -> (i32, i32) {
    %c0_i32 = arith.constant 0 : i32
    %c0_i32_0 = arith.constant 0 : i32
    return %c0_i32, %arg0 : i32, i32
  }
  func.func @transform_1(%arg0: i32) -> (i32, i32) {
    %c0_i32 = arith.constant 0 : i32
    %c0_i32_0 = arith.constant 0 : i32
    %c0_i32_1 = arith.constant 0 : i32
    return %c0_i32, %c0_i32_0 : i32, i32
  }
  func.func @transform_2(%arg0: i32) -> (i32, i32) {
    %c0_i32 = arith.constant 0 : i32
    %c0_i32_0 = arith.constant 0 : i32
    %c0_i32_1 = arith.constant 0 : i32
    return %c0_i32, %c0_i32_0 : i32, i32
  }
  func.func @transform_3(%arg0: i32) -> (i32, i32) {
    %c0_i32 = arith.constant 0 : i32
    %c0_i32_0 = arith.constant 0 : i32
    %c0_i32_1 = arith.constant 0 : i32
    return %c0_i32, %c0_i32_0 : i32, i32
  }
  func.func @transform_4(%arg0: i32) -> (i32, i32) {
    %c0_i32 = arith.constant 0 : i32
    %c0_i32_0 = arith.constant 0 : i32
    %c0_i32_1 = arith.constant 0 : i32
    return %c0_i32, %c0_i32_0 : i32, i32
  }
  func.func @transform_5(%arg0: i32) -> (i32, i32) {
    %c0_i32 = arith.constant 0 : i32
    %c0_i32_0 = arith.constant 0 : i32
    %c0_i32_1 = arith.constant 0 : i32
    return %c0_i32, %c0_i32_0 : i32, i32
  }
  func.func @transform_6(%arg0: i32) -> (i32, i32) {
    %c0_i32 = arith.constant 0 : i32
    %c0_i32_0 = arith.constant 0 : i32
    %c0_i32_1 = arith.constant 0 : i32
    return %c0_i32, %c0_i32_0 : i32, i32
  }
  func.func @transform_7(%arg0: i32) -> (i32, i32) {
    %c0_i32 = arith.constant 0 : i32
    %c0_i32_0 = arith.constant 0 : i32
    return %c0_i32, %arg0 : i32, i32
  }
}

</mosaic_0001>

<llo_original>
// kernel: policy_forward.1
$region0: #{policy_forward.1}
  #allocation0 [shape = 'u32[]', space=smem, size = 0x4, offset = 0x4, fixed_abs, tag = 'smem constant byte address 0x4 - core index']
  #allocation1 [shape = 'u32[72,128]{1,0:T(1,128)}', space=vmem, size = 0x9000, scoped, tag = 'internal scratch']
  #allocation2 [shape = 'f32[1,1]{1,0:T(1,128)S(1)}', space=vmem, size = 0x200, scoped, tag = 'scoped memory for policy_forward.1']
  %s0 = inlined_call_operand.vmem [shape: f32[2,128], index: 0, kind: input, shape index: {}]
  %s1 = inlined_call_operand.vmem [shape: f32[32,2], index: 1, kind: input, shape index: {}]
  %s2 = inlined_call_operand.vmem [shape: f32[32,1], index: 2, kind: input, shape index: {}]
  %s3 = inlined_call_operand.vmem [shape: f32[32,32], index: 3, kind: input, shape index: {}]
  %s4 = inlined_call_operand.vmem [shape: f32[32,1], index: 4, kind: input, shape index: {}]
  %s5 = inlined_call_operand.vmem [shape: f32[32,1], index: 5, kind: input, shape index: {}]
  %s6 = inlined_call_operand.<no memory space> [shape: f32[1,1], index: 6, kind: input, shape index: {}]
  %s7 = inlined_call_operand.vmem [shape: f32[1,128], index: 7, kind: output, shape index: {}]
  %s8 = sld [smem:[#allocation0]]
  $region38: #{policy_forward.1} parent=0
    _
  %s10 = ssub.s32 1, %s8
  %s11 = scalar_select 0, %s10, %s8
  %v12 = vstv %s6
  %13 = vst [vmem:[#allocation2] sm:$0x1] %v12
  // Predicated region
  $region2: #{policy_forward.1} parent=0 // pred_check
    _
  $region3: #{policy_forward.1} parent=0 // pred_check_branch
    %15 = sbr.rel (0) target = $region5
  $region4: #{policy_forward.1} parent=0 // pred_region
    _
  $region5: #{policy_forward.1} parent=0 // pred_fallthru
    _
  // Predicated region
  $region6: #{policy_forward.1} parent=0 // pred_check
    _
  $region7: #{policy_forward.1} parent=0 // pred_check_branch
    %17 = sbr.rel (0) target = $region9
  $region8: #{policy_forward.1} parent=0 // pred_region
    _
  $region9: #{policy_forward.1} parent=0 // pred_fallthru
    _
  // Predicated region
  $region10: #{policy_forward.1} parent=0 // pred_check
    _
  $region11: #{policy_forward.1} parent=0 // pred_check_branch
    %19 = sbr.rel (0) target = $region13
  $region12: #{policy_forward.1} parent=0 // pred_region
    _
  $region13: #{policy_forward.1} parent=0 // pred_fallthru
    _
  // Predicated region
  $region14: #{policy_forward.1} parent=0 // pred_check
    _
  $region15: #{policy_forward.1} parent=0 // pred_check_branch
    %21 = sbr.rel (0) target = $region17
  $region16: #{policy_forward.1} parent=0 // pred_region
    _
  $region17: #{policy_forward.1} parent=0 // pred_fallthru
    _
  // Predicated region
  $region18: #{policy_forward.1} parent=0 // pred_check
    _
  $region19: #{policy_forward.1} parent=0 // pred_check_branch
    %23 = sbr.rel (0) target = $region21
  $region20: #{policy_forward.1} parent=0 // pred_region
    _
  $region21: #{policy_forward.1} parent=0 // pred_fallthru
    _
  // Predicated region
  $region22: #{policy_forward.1} parent=0 // pred_check
    _
  $region23: #{policy_forward.1} parent=0 // pred_check_branch
    %25 = sbr.rel (0) target = $region25
  $region24: #{policy_forward.1} parent=0 // pred_region
    _
  $region25: #{policy_forward.1} parent=0 // pred_fallthru
    _
  // Predicated region
  $region26: #{policy_forward.1} parent=0 // pred_check
    _
  $region27: #{policy_forward.1} parent=0 // pred_check_branch
    %27 = sbr.rel (0) target = $region29
  $region28: #{policy_forward.1} parent=0 // pred_region
    _
  $region29: #{policy_forward.1} parent=0 // pred_fallthru
    _
  %v28 = vld [vmem:[%s0] sm:$0x3]
  %v29 = vld [vmem:[%s1] sm:$0xff]
  %v30 = vld [vmem:[%s1 + $0x8] sm:$0xff]
  %v31 = vld [vmem:[%s1 + $0x10] sm:$0xff]
  %v32 = vld [vmem:[%s1 + $0x18] sm:$0xff]
  %v33 = vld [vmem:[%s2] sm:$0xff]
  %v34 = vld [vmem:[%s2 + $0x8] sm:$0xff]
  %v35 = vld [vmem:[%s2 + $0x10] sm:$0xff]
  %v36 = vld [vmem:[%s2 + $0x18] sm:$0xff]
  %38 = vset.pattern.permute.xlu0 0
  %39 = vperm.xlu0 %38, %v29
  %v40 = vpop.permute.xlu0 %39
  %43 = vset.pattern.permute.xlu0 0
  %44 = vperm.xlu0 %43, %v30
  %v45 = vpop.permute.xlu0 %44
  %48 = vset.pattern.permute.xlu0 0
  %49 = vperm.xlu0 %48, %v31
  %v50 = vpop.permute.xlu0 %49
  %53 = vset.pattern.permute.xlu0 0
  %54 = vperm.xlu0 %53, %v32
  %v55 = vpop.permute.xlu0 %54
  %v57 = vperm.slane %v28, 0
  %v58 = vmul.f32 %v40, %v57
  %v59 = vmul.f32 %v45, %v57
  %v60 = vmul.f32 %v50, %v57
  %v61 = vmul.f32 %v55, %v57
  %63 = vset.pattern.permute.xlu0 0
  %64 = vperm.xlu0 %63, %v33
  %v65 = vpop.permute.xlu0 %64
  %68 = vset.pattern.permute.xlu0 0
  %69 = vperm.xlu0 %68, %v34
  %v70 = vpop.permute.xlu0 %69
  %73 = vset.pattern.permute.xlu0 0
  %74 = vperm.xlu0 %73, %v35
  %v75 = vpop.permute.xlu0 %74
  %78 = vset.pattern.permute.xlu0 0
  %79 = vperm.xlu0 %78, %v36
  %v80 = vpop.permute.xlu0 %79
  %v82 = vadd.f32 %v65, %v58
  %v83 = vadd.f32 %v70, %v59
  %v84 = vadd.f32 %v75, %v60
  %v85 = vadd.f32 %v80, %v61
  %86 = vset.pattern.permute.xlu0 1
  %87 = vperm.xlu0 %86, %v29
  %v88 = vpop.permute.xlu0 %87
  %90 = vset.pattern.permute.xlu0 1
  %91 = vperm.xlu0 %90, %v30
  %v92 = vpop.permute.xlu0 %91
  %94 = vset.pattern.permute.xlu0 1
  %95 = vperm.xlu0 %94, %v31
  %v96 = vpop.permute.xlu0 %95
  %98 = vset.pattern.permute.xlu0 1
  %99 = vperm.xlu0 %98, %v32
  %v100 = vpop.permute.xlu0 %99
  %v102 = vperm.slane %v28, 1
  %v103 = vmul.f32 %v88, %v102
  %v104 = vmul.f32 %v92, %v102
  %v105 = vmul.f32 %v96, %v102
  %v106 = vmul.f32 %v100, %v102
  %v107 = vadd.f32 %v82, %v103
  %v108 = vadd.f32 %v83, %v104
  %v109 = vadd.f32 %v84, %v105
  %v110 = vadd.f32 %v85, %v106
  %v111 = vmul.f32 %v107, 0.01
  %v112 = vmul.f32 %v108, 0.01
  %v113 = vmul.f32 %v109, 0.01
  %v114 = vmul.f32 %v110, 0.01
  %v115 = vmax.f32 %v107, %v111
  %v116 = vmax.f32 %v108, %v112
  %v117 = vmax.f32 %v109, %v113
  %v118 = vmax.f32 %v110, %v114
  %v119 = vld [vmem:[%s3] sm:$0xff]
  %v120 = vld [vmem:[%s3 + $0x8] sm:$0xff]
  %v121 = vld [vmem:[%s3 + $0x10] sm:$0xff]
  %v122 = vld [vmem:[%s3 + $0x18] sm:$0xff]
  %v123 = vld [vmem:[%s4] sm:$0xff]
  %v124 = vld [vmem:[%s4 + $0x8] sm:$0xff]
  %v125 = vld [vmem:[%s4 + $0x10] sm:$0xff]
  %v126 = vld [vmem:[%s4 + $0x18] sm:$0xff]
  %128 = vset.pattern.permute.xlu0 0
  %129 = vperm.xlu0 %128, %v123
  %v130 = vpop.permute.xlu0 %129
  %133 = vset.pattern.permute.xlu0 0
  %134 = vperm.xlu0 %133, %v124
  %v135 = vpop.permute.xlu0 %134
  %138 = vset.pattern.permute.xlu0 0
  %139 = vperm.xlu0 %138, %v125
  %v140 = vpop.permute.xlu0 %139
  %143 = vset.pattern.permute.xlu0 0
  %144 = vperm.xlu0 %143, %v126
  %v145 = vpop.permute.xlu0 %144
  %vm147 = vcmask 261120
  %v149 = vsel %vm147, %v119, 0
  %v152 = vsel %vm147, %v120, 0
  %v155 = vsel %vm147, %v121, 0
  %v158 = vsel %vm147, %v122, 0
  %160 = vmatpush.msra.mxu0 0.0
  %161 = vmatpush.msra.mxu0 0.0
  %162 = vmatpush.msra.mxu0 0.0
  %163 = vmatpush.msra.mxu0 0.0
  %164 = vmatpush.msra.mxu0 0.0
  %165 = vmatpush.msra.mxu0 0.0
  %166 = vmatpush.msra.mxu0 0.0
  %167 = vmatpush.msra.mxu0 0.0
  %168 = vmatpush.msra.mxu0 0.0
  %169 = vmatpush.msra.mxu0 0.0
  %170 = vmatpush.msra.mxu0 0.0
  %171 = vmatpush.msra.mxu0 0.0
  %172 = vmatpush.msra.mxu0 %v118
  %173 = vmatpush.msra.mxu0 %v117
  %174 = vmatpush.msra.mxu0 %v116
  %175 = vmatpush.msra.mxu0 %v115
  %176 = vmatmul.f32.gmra.mxu0 %v149
  %v177 = vpop.f32.mrf.mxu0
  %v178 = vadd.f32 %v130, %v177
  %179 = vmatmul.f32.gmra.mxu0 %v152
  %v180 = vpop.f32.mrf.mxu0
  %v181 = vadd.f32 %v135, %v180
  %182 = vmatmul.f32.gmra.mxu0 %v155
  %v183 = vpop.f32.mrf.mxu0
  %v184 = vadd.f32 %v140, %v183
  %185 = vmatmul.f32.gmra.mxu0 %v158
  %v186 = vpop.f32.mrf.mxu0
  %v187 = vadd.f32 %v145, %v186
  %188 = vdwg.mxu0
  %v189 = vmul.f32 %v178, 0.01
  %v190 = vmul.f32 %v181, 0.01
  %v191 = vmul.f32 %v184, 0.01
  %v192 = vmul.f32 %v187, 0.01
  %v193 = vmax.f32 %v178, %v189
  %v194 = vmax.f32 %v181, %v190
  %v195 = vmax.f32 %v184, %v191
  %v196 = vmax.f32 %v187, %v192
  %v197 = vld [vmem:[%s5] sm:$0xff]
  %v198 = vld [vmem:[%s5 + $0x8] sm:$0xff]
  %v199 = vld [vmem:[%s5 + $0x10] sm:$0xff]
  %v200 = vld [vmem:[%s5 + $0x18] sm:$0xff]
  %v201 = vld [vmem:[#allocation2] sm:$0x1]
  %203 = vset.pattern.permute.xlu0 0
  %204 = vperm.xlu0 %203, %v197
  %v205 = vpop.permute.xlu0 %204
  %208 = vset.pattern.permute.xlu0 0
  %209 = vperm.xlu0 %208, %v198
  %v210 = vpop.permute.xlu0 %209
  %213 = vset.pattern.permute.xlu0 0
  %214 = vperm.xlu0 %213, %v199
  %v215 = vpop.permute.xlu0 %214
  %218 = vset.pattern.permute.xlu0 0
  %219 = vperm.xlu0 %218, %v200
  %v220 = vpop.permute.xlu0 %219
  %v222 = vmul.f32 %v205, %v193
  %v223 = vmul.f32 %v210, %v194
  %v224 = vmul.f32 %v215, %v195
  %v225 = vmul.f32 %v220, %v196
  %v226 = vadd.f32 %v222, %v223
  %v227 = vadd.f32 %v226, %v224
  %v228 = vadd.f32 %v227, %v225
  %v229 = vrot.slane %v228, 4
  %v230 = vadd.f32 %v228, %v229
  %v231 = vrot.slane %v230, 2
  %v232 = vadd.f32 %v230, %v231
  %v233 = vrot.slane %v232, 1
  %v234 = vadd.f32 %v232, %v233
  %236 = vset.pattern.permute.xlu0 0
  %237 = vperm.xlu0 %236, %v201
  %v238 = vpop.permute.xlu0 %237
  %v240 = vperm.slane %v238, 0
  %v241 = vadd.f32 %v234, %v240
  %v242 = vtanh.pop %v241
  %243 = vst [vmem:[%s7] sm:$0x1] %v242
  // Predicated region
  $region30: #{policy_forward.1} parent=0 // pred_check
    _
  $region31: #{policy_forward.1} parent=0 // pred_check_branch
    %245 = sbr.rel (0) target = $region33
  $region32: #{policy_forward.1} parent=0 // pred_region
    _
  $region33: #{policy_forward.1} parent=0 // pred_fallthru
    _
  // Predicated region
  $region34: #{policy_forward.1} parent=0 // pred_check
    _
  $region35: #{policy_forward.1} parent=0 // pred_check_branch
    %247 = sbr.rel (0) target = $region37
  $region36: #{policy_forward.1} parent=0 // pred_region
    _
  $region37: #{policy_forward.1} parent=0 // pred_fallthru
    _

</llo_original>
